<compile_context>
chip_gen: v7x
topology: tpu7x:2x2x1
jax: 0.10.0
libtpu: 0.0.40
codegen_flags: <defaults>
</compile_context>

<pallas_src>
import functools

import jax
import jax.numpy as jnp
from jax.experimental import pallas as pl
from jax.experimental.pallas import tpu as pltpu


TM_MAX = 512    # row tile (multiple of 32 for int8 sublane packing)
TK_MAX = 4096   # reduction (adj column) tile, lane aligned


def _ceil_to(v, m):
    return ((v + m - 1) // m) * m


def graphconv_tiles(n, tm_max=TM_MAX, tk_max=TK_MAX):
    """Tile sizes and padded extents as a function of the node count."""
    tm = min(tm_max, _ceil_to(n, 32))     # 32-aligned rows (int8 native tiling)
    tk = min(tk_max, _ceil_to(n, 128))    # 128-aligned reduction columns
    n_rows_pad = _ceil_to(n, tm)
    # v7x megacore: keep an even number of row blocks so the "parallel" row axis
    # splits evenly across the 2 TensorCores.
    n_blocks = n_rows_pad // tm
    if n_blocks > 1 and n_blocks % 2 == 1:
        n_rows_pad += tm
    n_cols_pad = _ceil_to(n, tk)
    n_x_pad = max(n_rows_pad, n_cols_pad)
    return tm, tk, n_rows_pad, n_cols_pad, n_x_pad


def prepare_adj(adj, tm_max=TM_MAX, tk_max=TK_MAX):
    """One-time conversion of the dense 0/1 adjacency to a padded int8 array.

    Do this ONCE and reuse it across layers / forward passes: int8 streaming
    quarters the dominant HBM traffic vs f32 (and halves vs bf16), and hoisting
    the pad+cast avoids re-materializing an N x N array on every call.
    NOTE: assumes a 0/1 adjacency (exact in int8); for a weighted adjacency use
    bf16 here instead.
    """
    n = adj.shape[0]
    tm, tk, n_rows_pad, n_cols_pad, _ = graphconv_tiles(n, tm_max, tk_max)
    return jnp.pad(adj.astype(jnp.int8),
                   ((0, n_rows_pad - n), (0, n_cols_pad - n)))


def graphconv_kernel(x_ref, adj_ref, w_rel_ref, w_root_ref, b_ref, o_ref, acc_ref):
    i = pl.program_id(0)          # row block
    k = pl.program_id(1)          # reduction block (last grid axis, "arbitrary")
    tm = acc_ref.shape[0]
    tk = adj_ref.shape[1]

    @pl.when(k == 0)
    def _():
        acc_ref[...] = jnp.zeros_like(acc_ref)

    # int8 adj tile -> f32 upcast on the VPU (free filler, the kernel is DMA-bound
    # on adj); RHS comes from the single resident f32 copy of x.  f32 contraction
    # keeps parity with the f32 PyTorch module.
    x_k = x_ref[pl.ds(pl.multiple_of(k * tk, tk), tk), :]
    acc_ref[...] += jnp.dot(adj_ref[...].astype(jnp.float32), x_k,
                            preferred_element_type=jnp.float32)

    @pl.when(k == pl.num_programs(1) - 1)
    def _():
        # Epilogue: two small dots instead of a lane-axis concat + fused weight.
        x_rows = x_ref[pl.ds(pl.multiple_of(i * tm, tm), tm), :]
        out = (jnp.dot(x_rows, w_rel_ref[...], preferred_element_type=jnp.float32)
               + jnp.dot(acc_ref[...], w_root_ref[...],
                         preferred_element_type=jnp.float32)
               + b_ref[...])
        o_ref[...] = out.astype(o_ref.dtype)


@functools.partial(jax.jit, static_argnames=("tm_max", "tk_max"))
def custom_graph_conv(x, adj_i8, w_rel, b_rel, w_root,
                      tm_max=TM_MAX, tk_max=TK_MAX):
    """out = x @ w_rel + b_rel + (adj @ x) @ w_root       (shape [N, F_out])

    x      : [N, F_in]  f32
    adj_i8 : padded int8 adjacency from prepare_adj(adj)  (0/1 entries)
    w_rel  : [F_in, F_out]   (= torch lin_rel.weight.T)
    b_rel  : [1, F_out]      (= torch lin_rel.bias[None, :])
    w_root : [F_in, F_out]   (= torch lin_root.weight.T; lin_root has no bias)
    """
    n, f_in = x.shape
    f_out = w_rel.shape[1]
    tm, tk, n_rows_pad, n_cols_pad, n_x_pad = graphconv_tiles(n, tm_max, tk_max)
    assert adj_i8.shape == (n_rows_pad, n_cols_pad) and adj_i8.dtype == jnp.int8, \
        "adj must be preprocessed with prepare_adj() using the same tile settings"
    # Resident-x path: fine while x fits comfortably in VMEM. For very large N,
    # switch x back to a per-k streamed BlockSpec instead.
    assert n_x_pad * f_in * 4 <= 12 * 1024 * 1024, "x too large to keep resident"

    f_out_pad = _ceil_to(f_out, 128)      # lane-dense output -> unmasked stores

    # x / weights / bias are tiny: pad here (cheap) and keep resident in VMEM.
    x_pad = jnp.pad(x, ((0, n_x_pad - n), (0, 0)))
    w_rel_p = jnp.pad(w_rel, ((0, 0), (0, f_out_pad - f_out)))
    w_root_p = jnp.pad(w_root, ((0, 0), (0, f_out_pad - f_out)))
    b_pad = jnp.pad(b_rel, ((0, 0), (0, f_out_pad - f_out)))

    grid = (n_rows_pad // tm, n_cols_pad // tk)

    # Honest byte count: adj streamed once as int8, x/weights resident (read once),
    # output written once.
    cost = pl.CostEstimate(
        flops=2 * n_rows_pad * n_cols_pad * f_in
              + 2 * 2 * n_rows_pad * f_in * f_out_pad,
        transcendentals=0,
        bytes_accessed=(adj_i8.size
                        + x_pad.size * 4
                        + (w_rel_p.size + w_root_p.size + b_pad.size) * 4
                        + n_rows_pad * f_out_pad * 4),
    )

    out = pl.pallas_call(
        graphconv_kernel,
        out_shape=jax.ShapeDtypeStruct((n_rows_pad, f_out_pad), x.dtype),
        grid=grid,
        in_specs=[
            pl.BlockSpec((n_x_pad, f_in), lambda i, k: (0, 0)),      # resident f32 x
            pl.BlockSpec((tm, tk), lambda i, k: (i, k)),             # int8 adj tile
            pl.BlockSpec((f_in, f_out_pad), lambda i, k: (0, 0)),    # W_rel (resident)
            pl.BlockSpec((f_in, f_out_pad), lambda i, k: (0, 0)),    # W_root (resident)
            pl.BlockSpec((1, f_out_pad), lambda i, k: (0, 0)),       # bias (resident)
        ],
        out_specs=pl.BlockSpec((tm, f_out_pad), lambda i, k: (i, 0)),
        scratch_shapes=[pltpu.VMEM((tm, f_in), jnp.float32)],        # adj@x accumulator
        compiler_params=pltpu.CompilerParams(
            dimension_semantics=("parallel", "arbitrary"),
            vmem_limit_bytes=32 * 1024 * 1024),
        cost_estimate=cost,
    )(x_pad, adj_i8, w_rel_p, w_root_p, b_pad)

    return out[:n, :f_out]


def _reference(x, adj, w_rel, b_rel, w_root):
    return (x @ w_rel + b_rel) + (adj @ x) @ w_root


if __name__ == "__main__":
    key = jax.random.PRNGKey(0)
    k_x, k_adj, k_wr, k_br, k_wo, k2 = jax.random.split(key, 6)

    # Small shapes consistent with the module: N nodes, input/output features.
    N, F_IN, F_OUT = 16, 32, 64

    x = jax.random.normal(k_x, (N, F_IN), dtype=jnp.float32)
    adj = (jax.random.uniform(k_adj, (N, N)) > 0.7).astype(jnp.float32)

    # Synthetic parameters mimicking nn.Linear's uniform init.
    # PyTorch lin_*.weight is [F_OUT, F_IN]; we store the transpose [F_IN, F_OUT].
    bound = 1.0 / jnp.sqrt(F_IN)
    w_rel = jax.random.uniform(k_wr, (F_IN, F_OUT), minval=-bound, maxval=bound,
                               dtype=jnp.float32)
    b_rel = jax.random.uniform(k_br, (1, F_OUT), minval=-bound, maxval=bound,
                               dtype=jnp.float32)
    w_root = jax.random.uniform(k_wo, (F_IN, F_OUT), minval=-bound, maxval=bound,
                                dtype=jnp.float32)

    # One-time adjacency preprocessing (hoisted: reuse across forwards / layers).
    adj_i8 = jax.block_until_ready(prepare_adj(adj))

    out = jax.block_until_ready(custom_graph_conv(x, adj_i8, w_rel, b_rel, w_root))
    assert out.shape == (N, F_OUT)
    ref = _reference(x, adj, w_rel, b_rel, w_root)
    assert jnp.allclose(out, ref, atol=1e-3, rtol=1e-3), "mismatch vs f32 reference"

    # Second, ragged-shaped check with small tile caps so the multi-block row axis
    # and the multi-step reduction (accumulator) path are actually exercised.
    N2, F2_IN, F2_OUT = 300, 48, 40
    ka, kb, kc, kd, ke = jax.random.split(k2, 5)
    x2 = jax.random.normal(ka, (N2, F2_IN), dtype=jnp.float32)
    adj2 = (jax.random.uniform(kb, (N2, N2)) > 0.9).astype(jnp.float32)
    w_rel2 = jax.random.normal(kc, (F2_IN, F2_OUT), dtype=jnp.float32) * 0.1
    b_rel2 = jax.random.normal(kd, (1, F2_OUT), dtype=jnp.float32) * 0.1
    w_root2 = jax.random.normal(ke, (F2_IN, F2_OUT), dtype=jnp.float32) * 0.1

    adj2_i8 = prepare_adj(adj2, tm_max=64, tk_max=128)
    out2 = jax.block_until_ready(
        custom_graph_conv(x2, adj2_i8, w_rel2, b_rel2, w_root2,
                          tm_max=64, tk_max=128))
    ref2 = _reference(x2, adj2, w_rel2, b_rel2, w_root2)
    assert out2.shape == (N2, F2_OUT)
    assert jnp.allclose(out2, ref2, atol=1e-3, rtol=1e-3), "mismatch (tiled case)"

    print("KERNEL_OK")
</pallas_src>

<mosaic_0001>
module attributes {stable_mosaic.version = 11 : i64} {
  func.func @graphconv_kernel(%arg0: i32, %arg1: i32, %arg2: memref<128x32xf32, #tpu.memory_space<vmem>>, %arg3: memref<32x128xi8, #tpu.memory_space<vmem>>, %arg4: memref<32x128xf32, #tpu.memory_space<vmem>>, %arg5: memref<32x128xf32, #tpu.memory_space<vmem>>, %arg6: memref<1x128xf32, #tpu.memory_space<vmem>>, %arg7: memref<32x128xf32, #tpu.memory_space<vmem>>, %arg8: memref<32x32xf32, #tpu.memory_space<vmem>>) attributes {dimension_semantics = [#tpu.dimension_semantics<parallel>, #tpu.dimension_semantics<arbitrary>], iteration_bounds = array<i64: 1, 1>, scalar_prefetch = 0 : i64, scratch_operands = 1 : i64, tpu.core_type = #tpu.core_type<tc>, window_params = [{pipeline_mode = #tpu.pipeline_mode<synchronous>, transform_indices = @transform_0, window_bounds = array<i64: 128, 32>}, {transform_indices = @transform_1, window_bounds = array<i64: 32, 128>}, {pipeline_mode = #tpu.pipeline_mode<synchronous>, transform_indices = @transform_2, window_bounds = array<i64: 32, 128>}, {pipeline_mode = #tpu.pipeline_mode<synchronous>, transform_indices = @transform_3, window_bounds = array<i64: 32, 128>}, {pipeline_mode = #tpu.pipeline_mode<synchronous>, transform_indices = @transform_4, window_bounds = array<i64: 1, 128>}, {transform_indices = @transform_5, window_bounds = array<i64: 32, 128>}]} {
    %c0_i32 = arith.constant 0 : i32
    %0 = arith.cmpi eq, %arg1, %c0_i32 : i32
    %1 = arith.extui %0 : i1 to i32
    %c0_i32_0 = arith.constant 0 : i32
    %2 = arith.cmpi ne, %1, %c0_i32_0 : i32
    scf.if %2 {
      %cst_9 = arith.constant 0.000000e+00 : f32
      %16 = vector.broadcast %cst_9 : f32 to vector<32x32xf32>
      %c0_10 = arith.constant 0 : index
      %c0_11 = arith.constant 0 : index
      %17 = vector.load %arg8[%c0_10, %c0_11] : memref<32x32xf32, #tpu.memory_space<vmem>>, vector<32x32xf32>
      tpu.vector_store %arg8[%c0_10, %c0_11], %16 {strides = array<i32>} : memref<32x32xf32, #tpu.memory_space<vmem>>, vector<32x32xf32>,
    } else {
    }
    %c128_i32 = arith.constant 128 : i32
    %3 = arith.muli %arg1, %c128_i32 : i32
    %4 = tpu.assume_multiple %3, 128 : i32
    %5 = arith.index_cast %4 : i32 to index
    %c0 = arith.constant 0 : index
    %6 = vector.load %arg2[%5, %c0] : memref<128x32xf32, #tpu.memory_space<vmem>>, vector<128x32xf32>
    %c0_1 = arith.constant 0 : index
    %c0_2 = arith.constant 0 : index
    %7 = vector.load %arg8[%c0_1, %c0_2] : memref<32x32xf32, #tpu.memory_space<vmem>>, vector<32x32xf32>
    %c0_3 = arith.constant 0 : index
    %c0_4 = arith.constant 0 : index
    %8 = vector.load %arg3[%c0_3, %c0_4] : memref<32x128xi8, #tpu.memory_space<vmem>>, vector<32x128xi8>
    %9 = arith.sitofp %8 : vector<32x128xi8> to vector<32x128xf32>
    %cst = arith.constant dense<0.000000e+00> : vector<32x32xf32>
    %10 = tpu.matmul %9, %6, %cst {dimension_numbers = #tpu.dot_dimension_numbers<[1], [0], [0], [1], [0, 0, 1, 1], [], []>} : vector<32x128xf32>, vector<128x32xf32>, vector<32x32xf32> -> vector<32x32xf32>
    %11 = arith.addf %7, %10 : vector<32x32xf32>
    %c0_5 = arith.constant 0 : index
    %c0_6 = arith.constant 0 : index
    %12 = vector.load %arg8[%c0_5, %c0_6] : memref<32x32xf32, #tpu.memory_space<vmem>>, vector<32x32xf32>
    tpu.vector_store %arg8[%c0_5, %c0_6], %11 {strides = array<i32>} : memref<32x32xf32, #tpu.memory_space<vmem>>, vector<32x32xf32>,
    %c0_i32_7 = arith.constant 0 : i32
    %13 = arith.cmpi eq, %arg1, %c0_i32_7 : i32
    %14 = arith.extui %13 : i1 to i32
    %c0_i32_8 = arith.constant 0 : i32
    %15 = arith.cmpi ne, %14, %c0_i32_8 : i32
    scf.if %15 {
      %c32_i32 = arith.constant 32 : i32
      %16 = arith.muli %arg0, %c32_i32 : i32
      %17 = tpu.assume_multiple %16, 32 : i32
      %18 = arith.index_cast %17 : i32 to index
      %c0_9 = arith.constant 0 : index
      %19 = vector.load %arg2[%18, %c0_9] : memref<128x32xf32, #tpu.memory_space<vmem>>, vector<32x32xf32>
      %c0_10 = arith.constant 0 : index
      %c0_11 = arith.constant 0 : index
      %20 = vector.load %arg4[%c0_10, %c0_11] : memref<32x128xf32, #tpu.memory_space<vmem>>, vector<32x128xf32>
      %cst_12 = arith.constant dense<0.000000e+00> : vector<32x128xf32>
      %21 = tpu.matmul %19, %20, %cst_12 {dimension_numbers = #tpu.dot_dimension_numbers<[1], [0], [0], [1], [0, 0, 1, 1], [], []>} : vector<32x32xf32>, vector<32x128xf32>, vector<32x128xf32> -> vector<32x128xf32>
      %c0_13 = arith.constant 0 : index
      %c0_14 = arith.constant 0 : index
      %22 = vector.load %arg8[%c0_13, %c0_14] : memref<32x32xf32, #tpu.memory_space<vmem>>, vector<32x32xf32>
      %c0_15 = arith.constant 0 : index
      %c0_16 = arith.constant 0 : index
      %23 = vector.load %arg5[%c0_15, %c0_16] : memref<32x128xf32, #tpu.memory_space<vmem>>, vector<32x128xf32>
      %cst_17 = arith.constant dense<0.000000e+00> : vector<32x128xf32>
      %24 = tpu.matmul %22, %23, %cst_17 {dimension_numbers = #tpu.dot_dimension_numbers<[1], [0], [0], [1], [0, 0, 1, 1], [], []>} : vector<32x32xf32>, vector<32x128xf32>, vector<32x128xf32> -> vector<32x128xf32>
      %25 = arith.addf %21, %24 : vector<32x128xf32>
      %c0_18 = arith.constant 0 : index
      %c0_19 = arith.constant 0 : index
      %26 = vector.load %arg6[%c0_18, %c0_19] : memref<1x128xf32, #tpu.memory_space<vmem>>, vector<1x128xf32>
      %27 = vector.broadcast %26 : vector<1x128xf32> to vector<32x128xf32>
      %28 = arith.addf %25, %27 : vector<32x128xf32>
      %c0_20 = arith.constant 0 : index
      %c0_21 = arith.constant 0 : index
      %29 = vector.load %arg7[%c0_20, %c0_21] : memref<32x128xf32, #tpu.memory_space<vmem>>, vector<32x128xf32>
      tpu.vector_store %arg7[%c0_20, %c0_21], %28 {strides = array<i32>} : memref<32x128xf32, #tpu.memory_space<vmem>>, vector<32x128xf32>,
    } else {
    }
    return
  }
  func.func @transform_0(%arg0: i32, %arg1: i32) -> (i32, i32) {
    %c0_i32 = arith.constant 0 : i32
    %c0_i32_0 = arith.constant 0 : i32
    %c0_i32_1 = arith.constant 0 : i32
    return %c0_i32, %c0_i32_0 : i32, i32
  }
  func.func @transform_1(%arg0: i32, %arg1: i32) -> (i32, i32) {
    %c0_i32 = arith.constant 0 : i32
    return %arg0, %arg1 : i32, i32
  }
  func.func @transform_2(%arg0: i32, %arg1: i32) -> (i32, i32) {
    %c0_i32 = arith.constant 0 : i32
    %c0_i32_0 = arith.constant 0 : i32
    %c0_i32_1 = arith.constant 0 : i32
    return %c0_i32, %c0_i32_0 : i32, i32
  }
  func.func @transform_3(%arg0: i32, %arg1: i32) -> (i32, i32) {
    %c0_i32 = arith.constant 0 : i32
    %c0_i32_0 = arith.constant 0 : i32
    %c0_i32_1 = arith.constant 0 : i32
    return %c0_i32, %c0_i32_0 : i32, i32
  }
  func.func @transform_4(%arg0: i32, %arg1: i32) -> (i32, i32) {
    %c0_i32 = arith.constant 0 : i32
    %c0_i32_0 = arith.constant 0 : i32
    %c0_i32_1 = arith.constant 0 : i32
    return %c0_i32, %c0_i32_0 : i32, i32
  }
  func.func @transform_5(%arg0: i32, %arg1: i32) -> (i32, i32) {
    %c0_i32 = arith.constant 0 : i32
    %c0_i32_0 = arith.constant 0 : i32
    return %arg0, %c0_i32 : i32, i32
  }
}

</mosaic_0001>

<llo_original>
// kernel: custom_graph_conv.1
$region0: #{custom_graph_conv.1}
  #allocation0 [shape = 'u32[]', space=smem, size = 0x4, offset = 0x4, fixed_abs, tag = 'smem constant byte address 0x4 - core index']
  #allocation1 [shape = 'u32[144,128]{1,0:T(1,128)}', space=vmem, size = 0x12000, scoped, tag = 'internal scratch']
  #allocation2 [shape = 'f32[32,32]{1,0:T(8,128)}', space=vmem, size = 0x4000, scoped, tag = 'scratch operand']
  %s0 = inlined_call_operand.vmem [shape: f32[128,32], index: 0, kind: input, shape index: {}]
  %s1 = inlined_call_operand.vmem [shape: s8[32,128], index: 1, kind: input, shape index: {}]
  %s2 = inlined_call_operand.vmem [shape: f32[32,128], index: 2, kind: input, shape index: {}]
  %s3 = inlined_call_operand.vmem [shape: f32[32,128], index: 3, kind: input, shape index: {}]
  %s4 = inlined_call_operand.vmem [shape: f32[1,128], index: 4, kind: input, shape index: {}]
  %s5 = inlined_call_operand.vmem [shape: f32[32,128], index: 5, kind: output, shape index: {}]
  %s6 = sld [smem:[#allocation0]]
  $region38: #{custom_graph_conv.1} parent=0
    _
  %s8 = ssub.s32 1, %s6
  %s9 = scalar_select 0, %s8, %s6
  // Predicated region
  $region2: #{custom_graph_conv.1} parent=0 // pred_check
    _
  $region3: #{custom_graph_conv.1} parent=0 // pred_check_branch
    %11 = sbr.rel (0) target = $region5
  $region4: #{custom_graph_conv.1} parent=0 // pred_region
    _
  $region5: #{custom_graph_conv.1} parent=0 // pred_fallthru
    _
  // Predicated region
  $region6: #{custom_graph_conv.1} parent=0 // pred_check
    _
  $region7: #{custom_graph_conv.1} parent=0 // pred_check_branch
    %13 = sbr.rel (0) target = $region9
  $region8: #{custom_graph_conv.1} parent=0 // pred_region
    _
  $region9: #{custom_graph_conv.1} parent=0 // pred_fallthru
    _
  // Predicated region
  $region10: #{custom_graph_conv.1} parent=0 // pred_check
    _
  $region11: #{custom_graph_conv.1} parent=0 // pred_check_branch
    %15 = sbr.rel (0) target = $region13
  $region12: #{custom_graph_conv.1} parent=0 // pred_region
    _
  $region13: #{custom_graph_conv.1} parent=0 // pred_fallthru
    _
  // Predicated region
  $region14: #{custom_graph_conv.1} parent=0 // pred_check
    _
  $region15: #{custom_graph_conv.1} parent=0 // pred_check_branch
    %17 = sbr.rel (0) target = $region17
  $region16: #{custom_graph_conv.1} parent=0 // pred_region
    _
  $region17: #{custom_graph_conv.1} parent=0 // pred_fallthru
    _
  // Predicated region
  $region18: #{custom_graph_conv.1} parent=0 // pred_check
    _
  $region19: #{custom_graph_conv.1} parent=0 // pred_check_branch
    %19 = sbr.rel (0) target = $region21
  $region20: #{custom_graph_conv.1} parent=0 // pred_region
    _
  $region21: #{custom_graph_conv.1} parent=0 // pred_fallthru
    _
  %p20 = scmp.eq.s32.totalorder 0, 0
  // Predicated region
  $region22: #{custom_graph_conv.1} parent=0 // pred_check
    %p21 = pneg %p20
  $region23: #{custom_graph_conv.1} parent=0 // pred_check_branch
    %23 = sbr.rel (%p21) target = $region25
  $region24: #{custom_graph_conv.1} parent=0 // pred_region
    %vm24 = vcmask 261120
    %25 = vst.msk [vmem:[#allocation2] sm:$0xff] %vm24, 0.0
    %26 = vst.msk [vmem:[#allocation2 + $0x8] sm:$0xff] %vm24, 0.0
    %27 = vst.msk [vmem:[#allocation2 + $0x10] sm:$0xff] %vm24, 0.0
    %28 = vst.msk [vmem:[#allocation2 + $0x18] sm:$0xff] %vm24, 0.0
  $region25: #{custom_graph_conv.1} parent=0 // pred_fallthru
    _
  %s29 = smul.u32 0, 128
  %s30 = scalar_lea.vmem %s0, %s29
  %v31 = vld [vmem:[%s30] sm:$0xff]
  %v32 = vld [vmem:[%s30 + $0x8] sm:$0xff]
  %v33 = vld [vmem:[%s30 + $0x10] sm:$0xff]
  %v34 = vld [vmem:[%s30 + $0x18] sm:$0xff]
  %v35 = vld [vmem:[%s30 + $0x20] sm:$0xff]
  %v36 = vld [vmem:[%s30 + $0x28] sm:$0xff]
  %v37 = vld [vmem:[%s30 + $0x30] sm:$0xff]
  %v38 = vld [vmem:[%s30 + $0x38] sm:$0xff]
  %v39 = vld [vmem:[%s30 + $0x40] sm:$0xff]
  %v40 = vld [vmem:[%s30 + $0x48] sm:$0xff]
  %v41 = vld [vmem:[%s30 + $0x50] sm:$0xff]
  %v42 = vld [vmem:[%s30 + $0x58] sm:$0xff]
  %v43 = vld [vmem:[%s30 + $0x60] sm:$0xff]
  %v44 = vld [vmem:[%s30 + $0x68] sm:$0xff]
  %v45 = vld [vmem:[%s30 + $0x70] sm:$0xff]
  %v46 = vld [vmem:[%s30 + $0x78] sm:$0xff]
  %v47 = vld [vmem:[#allocation2] sm:$0xff]
  %v48 = vld [vmem:[#allocation2 + $0x8] sm:$0xff]
  %v49 = vld [vmem:[#allocation2 + $0x10] sm:$0xff]
  %v50 = vld [vmem:[#allocation2 + $0x18] sm:$0xff]
  %v51 = vld [vmem:[%s1] sm:$0xff]
  %v52 = vunpack.c.0.s8 %v51
  %v53 = vunpack.c.1.s8 %v51
  %v54 = vunpack.c.2.s8 %v51
  %v55 = vunpack.c.3.s8 %v51
  %v56 = vcvt.s32.f32 %v52
  %v57 = vcvt.s32.f32 %v53
  %v58 = vcvt.s32.f32 %v54
  %v59 = vcvt.s32.f32 %v55
  %60 = vmatprep.subr.mxu0 0.0
  %61 = vmatpush1.msra.mxu0 %v31
  %62 = vmatprep.subr.mxu0 0.0
  %63 = vmatpush1.msra.mxu0 %v32
  %64 = vmatprep.subr.mxu0 0.0
  %65 = vmatpush1.msra.mxu0 %v33
  %66 = vmatprep.subr.mxu0 0.0
  %67 = vmatpush1.msra.mxu0 %v34
  %68 = vmatprep.subr.mxu0 0.0
  %69 = vmatpush1.msra.mxu0 %v35
  %70 = vmatprep.subr.mxu0 0.0
  %71 = vmatpush1.msra.mxu0 %v36
  %72 = vmatprep.subr.mxu0 0.0
  %73 = vmatpush1.msra.mxu0 %v37
  %74 = vmatprep.subr.mxu0 0.0
  %75 = vmatpush1.msra.mxu0 %v38
  %76 = vmatprep.subr.mxu0 0.0
  %77 = vmatpush1.msra.mxu0 %v39
  %78 = vmatprep.subr.mxu0 0.0
  %79 = vmatpush1.msra.mxu0 %v40
  %80 = vmatprep.subr.mxu0 0.0
  %81 = vmatpush1.msra.mxu0 %v41
  %82 = vmatprep.subr.mxu0 0.0
  %83 = vmatpush1.msra.mxu0 %v42
  %84 = vmatprep.subr.mxu0 0.0
  %85 = vmatpush1.msra.mxu0 %v43
  %86 = vmatprep.subr.mxu0 0.0
  %87 = vmatpush1.msra.mxu0 %v44
  %88 = vmatprep.subr.mxu0 0.0
  %89 = vmatpush1.msra.mxu0 %v45
  %90 = vmatprep.subr.mxu0 0.0
  %91 = vmatpush1.msra.mxu0 %v46
  %92 = vmatprep.subr.mxu0 0.0
  %93 = vmatpush1.msra.mxu0 0.0
  %94 = vmatprep.subr.mxu0 0.0
  %95 = vmatpush1.msra.mxu0 0.0
  %96 = vmatprep.subr.mxu0 0.0
  %97 = vmatpush1.msra.mxu0 0.0
  %98 = vmatprep.subr.mxu0 0.0
  %99 = vmatpush1.msra.mxu0 0.0
  %100 = vmatprep.subr.mxu0 0.0
  %101 = vmatpush1.msra.mxu0 0.0
  %102 = vmatprep.subr.mxu0 0.0
  %103 = vmatpush1.msra.mxu0 0.0
  %104 = vmatprep.subr.mxu0 0.0
  %105 = vmatpush1.msra.mxu0 0.0
  %106 = vmatprep.subr.mxu0 0.0
  %107 = vmatpush1.msra.mxu0 0.0
  %108 = vmatprep.subr.mxu0 0.0
  %109 = vmatpush1.msra.mxu0 0.0
  %110 = vmatprep.subr.mxu0 0.0
  %111 = vmatpush1.msra.mxu0 0.0
  %112 = vmatprep.subr.mxu0 0.0
  %113 = vmatpush1.msra.mxu0 0.0
  %114 = vmatprep.subr.mxu0 0.0
  %115 = vmatpush1.msra.mxu0 0.0
  %116 = vmatprep.subr.mxu0 0.0
  %117 = vmatpush1.msra.mxu0 0.0
  %118 = vmatprep.subr.mxu0 0.0
  %119 = vmatpush1.msra.mxu0 0.0
  %120 = vmatprep.subr.mxu0 0.0
  %121 = vmatpush1.msra.mxu0 0.0
  %122 = vmatprep.subr.mxu0 0.0
  %123 = vmatpush1.msra.mxu0 0.0
  %124 = vmatprep.mubr.f32.mxu0 0.0
  %125 = vmatmul.mubr.f32.gmra.mrb[0].mxu0 %v56
  %v126 = vpop.f32.mrb[0].mxu0
  %v127 = vadd.f32 0.0, %v126
  %v128 = vpop.f32.mrb[0].mxu0
  %129 = vmatprep.mubr.f32.mxu0 0.0
  %130 = vmatmul.mubr.f32.gmra.mrb[0].mxu0 %v57
  %v131 = vpop.f32.mrb[0].mxu0
  %v132 = vadd.f32 0.0, %v131
  %v133 = vpop.f32.mrb[0].mxu0
  %134 = vmatprep.mubr.f32.mxu0 0.0
  %135 = vmatmul.mubr.f32.gmra.mrb[0].mxu0 %v58
  %v136 = vpop.f32.mrb[0].mxu0
  %v137 = vadd.f32 0.0, %v136
  %v138 = vpop.f32.mrb[0].mxu0
  %139 = vmatprep.mubr.f32.mxu0 0.0
  %140 = vmatmul.mubr.f32.gmra.mrb[0].mxu0 %v59
  %v141 = vpop.f32.mrb[0].mxu0
  %v142 = vadd.f32 0.0, %v141
  %v143 = vpop.f32.mrb[0].mxu0
  %144 = vdwg.mxu0
  %v145 = vadd.f32 %v47, %v127
  %v146 = vadd.f32 %v48, %v132
  %v147 = vadd.f32 %v49, %v137
  %v148 = vadd.f32 %v50, %v142
  %vm149 = vcmask 261120
  %150 = vst.msk [vmem:[#allocation2] sm:$0xff] %vm149, %v145
  %151 = vst.msk [vmem:[#allocation2 + $0x8] sm:$0xff] %vm149, %v146
  %152 = vst.msk [vmem:[#allocation2 + $0x10] sm:$0xff] %vm149, %v147
  %153 = vst.msk [vmem:[#allocation2 + $0x18] sm:$0xff] %vm149, %v148
  // Predicated region
  $region26: #{custom_graph_conv.1} parent=0 // pred_check
    %p154 = pneg %p20
  $region27: #{custom_graph_conv.1} parent=0 // pred_check_branch
    %156 = sbr.rel (%p154) target = $region29
  $region28: #{custom_graph_conv.1} parent=0 // pred_region
    %s157 = smul.u32 0, 32
    %s158 = scalar_lea.vmem %s0, %s157
    %v159 = vld [vmem:[%s158] sm:$0xff]
    %v160 = vld [vmem:[%s158 + $0x8] sm:$0xff]
    %v161 = vld [vmem:[%s158 + $0x10] sm:$0xff]
    %v162 = vld [vmem:[%s158 + $0x18] sm:$0xff]
    %v163 = vld [vmem:[%s2] sm:$0xff]
    %v164 = vld [vmem:[%s2 + $0x8] sm:$0xff]
    %v165 = vld [vmem:[%s2 + $0x10] sm:$0xff]
    %v166 = vld [vmem:[%s2 + $0x18] sm:$0xff]
    %v167 = vld [vmem:[#allocation2] sm:$0xff]
    %v168 = vld [vmem:[#allocation2 + $0x8] sm:$0xff]
    %v169 = vld [vmem:[#allocation2 + $0x10] sm:$0xff]
    %v170 = vld [vmem:[#allocation2 + $0x18] sm:$0xff]
    %v171 = vld [vmem:[%s3] sm:$0xff]
    %v172 = vld [vmem:[%s3 + $0x8] sm:$0xff]
    %v173 = vld [vmem:[%s3 + $0x10] sm:$0xff]
    %v174 = vld [vmem:[%s3 + $0x18] sm:$0xff]
    %v176 = vsel %vm149, %v167, 0
    %v179 = vsel %vm149, %v168, 0
    %v182 = vsel %vm149, %v169, 0
    %v185 = vsel %vm149, %v170, 0
    %187 = vmatprep.subr.mxu0 0.0
    %188 = vmatpush1.msra.mxu0 %v171
    %189 = vmatprep.subr.mxu0 0.0
    %190 = vmatpush1.msra.mxu0 %v172
    %191 = vmatprep.subr.mxu0 0.0
    %192 = vmatpush1.msra.mxu0 %v173
    %193 = vmatprep.subr.mxu0 0.0
    %194 = vmatpush1.msra.mxu0 %v174
    %195 = vmatprep.subr.mxu0 0.0
    %196 = vmatpush1.msra.mxu0 0.0
    %197 = vmatprep.subr.mxu0 0.0
    %198 = vmatpush1.msra.mxu0 0.0
    %199 = vmatprep.subr.mxu0 0.0
    %200 = vmatpush1.msra.mxu0 0.0
    %201 = vmatprep.subr.mxu0 0.0
    %202 = vmatpush1.msra.mxu0 0.0
    %203 = vmatprep.subr.mxu0 0.0
    %204 = vmatpush1.msra.mxu0 0.0
    %205 = vmatprep.subr.mxu0 0.0
    %206 = vmatpush1.msra.mxu0 0.0
    %207 = vmatprep.subr.mxu0 0.0
    %208 = vmatpush1.msra.mxu0 0.0
    %209 = vmatprep.subr.mxu0 0.0
    %210 = vmatpush1.msra.mxu0 0.0
    %211 = vmatprep.subr.mxu0 0.0
    %212 = vmatpush1.msra.mxu0 0.0
    %213 = vmatprep.subr.mxu0 0.0
    %214 = vmatpush1.msra.mxu0 0.0
    %215 = vmatprep.subr.mxu0 0.0
    %216 = vmatpush1.msra.mxu0 0.0
    %217 = vmatprep.subr.mxu0 0.0
    %218 = vmatpush1.msra.mxu0 0.0
    %219 = vmatprep.subr.mxu0 0.0
    %220 = vmatpush1.msra.mxu0 0.0
    %221 = vmatprep.subr.mxu0 0.0
    %222 = vmatpush1.msra.mxu0 0.0
    %223 = vmatprep.subr.mxu0 0.0
    %224 = vmatpush1.msra.mxu0 0.0
    %225 = vmatprep.subr.mxu0 0.0
    %226 = vmatpush1.msra.mxu0 0.0
    %227 = vmatprep.subr.mxu0 0.0
    %228 = vmatpush1.msra.mxu0 0.0
    %229 = vmatprep.subr.mxu0 0.0
    %230 = vmatpush1.msra.mxu0 0.0
    %231 = vmatprep.subr.mxu0 0.0
    %232 = vmatpush1.msra.mxu0 0.0
    %233 = vmatprep.subr.mxu0 0.0
    %234 = vmatpush1.msra.mxu0 0.0
    %235 = vmatprep.subr.mxu0 0.0
    %236 = vmatpush1.msra.mxu0 0.0
    %237 = vmatprep.subr.mxu0 0.0
    %238 = vmatpush1.msra.mxu0 0.0
    %239 = vmatprep.subr.mxu0 0.0
    %240 = vmatpush1.msra.mxu0 0.0
    %241 = vmatprep.subr.mxu0 0.0
    %242 = vmatpush1.msra.mxu0 0.0
    %243 = vmatprep.subr.mxu0 0.0
    %244 = vmatpush1.msra.mxu0 0.0
    %245 = vmatprep.subr.mxu0 0.0
    %246 = vmatpush1.msra.mxu0 0.0
    %247 = vmatprep.subr.mxu0 0.0
    %248 = vmatpush1.msra.mxu0 0.0
    %249 = vmatprep.subr.mxu0 0.0
    %250 = vmatpush1.msra.mxu0 0.0
    %251 = vmatprep.mubr.f32.mxu0 0.0
    %252 = vmatmul.mubr.f32.gmra.mrb[0].mxu0 %v176
    %v253 = vpop.f32.mrb[0].mxu0
    %v254 = vadd.f32 0.0, %v253
    %v255 = vpop.f32.mrb[0].mxu0
    %256 = vmatprep.mubr.f32.mxu0 0.0
    %257 = vmatmul.mubr.f32.gmra.mrb[0].mxu0 %v179
    %v258 = vpop.f32.mrb[0].mxu0
    %v259 = vadd.f32 0.0, %v258
    %v260 = vpop.f32.mrb[0].mxu0
    %261 = vmatprep.mubr.f32.mxu0 0.0
    %262 = vmatmul.mubr.f32.gmra.mrb[0].mxu0 %v182
    %v263 = vpop.f32.mrb[0].mxu0
    %v264 = vadd.f32 0.0, %v263
    %v265 = vpop.f32.mrb[0].mxu0
    %266 = vmatprep.mubr.f32.mxu0 0.0
    %267 = vmatmul.mubr.f32.gmra.mrb[0].mxu0 %v185
    %v268 = vpop.f32.mrb[0].mxu0
    %v269 = vadd.f32 0.0, %v268
    %v270 = vpop.f32.mrb[0].mxu0
    %271 = vdwg.mxu0
    %v273 = vsel %vm149, %v159, 0
    %v276 = vsel %vm149, %v160, 0
    %v279 = vsel %vm149, %v161, 0
    %v282 = vsel %vm149, %v162, 0
    %284 = vmatprep.subr.mxu0 0.0
    %285 = vmatpush1.msra.mxu0 %v163
    %286 = vmatprep.subr.mxu0 0.0
    %287 = vmatpush1.msra.mxu0 %v164
    %288 = vmatprep.subr.mxu0 0.0
    %289 = vmatpush1.msra.mxu0 %v165
    %290 = vmatprep.subr.mxu0 0.0
    %291 = vmatpush1.msra.mxu0 %v166
    %292 = vmatprep.subr.mxu0 0.0
    %293 = vmatpush1.msra.mxu0 0.0
    %294 = vmatprep.subr.mxu0 0.0
    %295 = vmatpush1.msra.mxu0 0.0
    %296 = vmatprep.subr.mxu0 0.0
    %297 = vmatpush1.msra.mxu0 0.0
    %298 = vmatprep.subr.mxu0 0.0
    %299 = vmatpush1.msra.mxu0 0.0
    %300 = vmatprep.subr.mxu0 0.0
    %301 = vmatpush1.msra.mxu0 0.0
    %302 = vmatprep.subr.mxu0 0.0
    %303 = vmatpush1.msra.mxu0 0.0
    %304 = vmatprep.subr.mxu0 0.0
    %305 = vmatpush1.msra.mxu0 0.0
    %306 = vmatprep.subr.mxu0 0.0
    %307 = vmatpush1.msra.mxu0 0.0
    %308 = vmatprep.subr.mxu0 0.0
    %309 = vmatpush1.msra.mxu0 0.0
    %310 = vmatprep.subr.mxu0 0.0
    %311 = vmatpush1.msra.mxu0 0.0
    %312 = vmatprep.subr.mxu0 0.0
    %313 = vmatpush1.msra.mxu0 0.0
    %314 = vmatprep.subr.mxu0 0.0
    %315 = vmatpush1.msra.mxu0 0.0
    %316 = vmatprep.subr.mxu0 0.0
    %317 = vmatpush1.msra.mxu0 0.0
    %318 = vmatprep.subr.mxu0 0.0
    %319 = vmatpush1.msra.mxu0 0.0
    %320 = vmatprep.subr.mxu0 0.0
    %321 = vmatpush1.msra.mxu0 0.0
    %322 = vmatprep.subr.mxu0 0.0
    %323 = vmatpush1.msra.mxu0 0.0
    %324 = vmatprep.subr.mxu0 0.0
    %325 = vmatpush1.msra.mxu0 0.0
    %326 = vmatprep.subr.mxu0 0.0
    %327 = vmatpush1.msra.mxu0 0.0
    %328 = vmatprep.subr.mxu0 0.0
    %329 = vmatpush1.msra.mxu0 0.0
    %330 = vmatprep.subr.mxu0 0.0
    %331 = vmatpush1.msra.mxu0 0.0
    %332 = vmatprep.subr.mxu0 0.0
    %333 = vmatpush1.msra.mxu0 0.0
    %334 = vmatprep.subr.mxu0 0.0
    %335 = vmatpush1.msra.mxu0 0.0
    %336 = vmatprep.subr.mxu0 0.0
    %337 = vmatpush1.msra.mxu0 0.0
    %338 = vmatprep.subr.mxu0 0.0
    %339 = vmatpush1.msra.mxu0 0.0
    %340 = vmatprep.subr.mxu0 0.0
    %341 = vmatpush1.msra.mxu0 0.0
    %342 = vmatprep.subr.mxu0 0.0
    %343 = vmatpush1.msra.mxu0 0.0
    %344 = vmatprep.subr.mxu0 0.0
    %345 = vmatpush1.msra.mxu0 0.0
    %346 = vmatprep.subr.mxu0 0.0
    %347 = vmatpush1.msra.mxu0 0.0
    %348 = vmatprep.mubr.f32.mxu0 0.0
    %349 = vmatmul.mubr.f32.gmra.mrb[0].mxu0 %v273
    %v350 = vpop.f32.mrb[0].mxu0
    %v351 = vadd.f32 %v254, %v350
    %v352 = vpop.f32.mrb[0].mxu0
    %353 = vmatprep.mubr.f32.mxu0 0.0
    %354 = vmatmul.mubr.f32.gmra.mrb[0].mxu0 %v276
    %v355 = vpop.f32.mrb[0].mxu0
    %v356 = vadd.f32 %v259, %v355
    %v357 = vpop.f32.mrb[0].mxu0
    %358 = vmatprep.mubr.f32.mxu0 0.0
    %359 = vmatmul.mubr.f32.gmra.mrb[0].mxu0 %v279
    %v360 = vpop.f32.mrb[0].mxu0
    %v361 = vadd.f32 %v264, %v360
    %v362 = vpop.f32.mrb[0].mxu0
    %363 = vmatprep.mubr.f32.mxu0 0.0
    %364 = vmatmul.mubr.f32.gmra.mrb[0].mxu0 %v282
    %v365 = vpop.f32.mrb[0].mxu0
    %v366 = vadd.f32 %v269, %v365
    %v367 = vpop.f32.mrb[0].mxu0
    %368 = vdwg.mxu0
    %v369 = vld [vmem:[%s4] sm:$0x1]
    %v371 = vlaneseq
    %v372 = vshrl.u32 %v371, 7
    %v373 = vsub.s32 0, %v372
    %v374 = vrot.slane %v369, %v373
    %v376 = vadd.f32 %v351, %v374
    %v377 = vadd.f32 %v356, %v374
    %v378 = vadd.f32 %v361, %v374
    %v379 = vadd.f32 %v366, %v374
    %380 = vst [vmem:[%s5] sm:$0xff] %v376
    %381 = vst [vmem:[%s5 + $0x8] sm:$0xff] %v377
    %382 = vst [vmem:[%s5 + $0x10] sm:$0xff] %v378
    %383 = vst [vmem:[%s5 + $0x18] sm:$0xff] %v379
  $region29: #{custom_graph_conv.1} parent=0 // pred_fallthru
    _
  // Predicated region
  $region30: #{custom_graph_conv.1} parent=0 // pred_check
    _
  $region31: #{custom_graph_conv.1} parent=0 // pred_check_branch
    %385 = sbr.rel (0) target = $region33
  $region32: #{custom_graph_conv.1} parent=0 // pred_region
    _
  $region33: #{custom_graph_conv.1} parent=0 // pred_fallthru
    _
  // Predicated region
  $region34: #{custom_graph_conv.1} parent=0 // pred_check
    _
  $region35: #{custom_graph_conv.1} parent=0 // pred_check_branch
    %387 = sbr.rel (0) target = $region37
  $region36: #{custom_graph_conv.1} parent=0 // pred_region
    _
  $region37: #{custom_graph_conv.1} parent=0 // pred_fallthru
    _

</llo_original>
